<compile_context>
chip_gen: v7x
topology: tpu7x:2x2x1
jax: 0.10.0
libtpu: 0.0.40
codegen_flags: <defaults>
</compile_context>

<pallas_src>
import functools

import numpy as np
import jax
import jax.numpy as jnp
from jax.experimental import pallas as pl
from jax.experimental.pallas import tpu as pltpu

_MIB = 1024 * 1024


def _round_up(x: int, m: int) -> int:
    return ((x + m - 1) // m) * m


def _vmem_budget():
    """(physical VMEM bytes, per-kernel tile working-set budget in bytes)."""
    try:
        phys = int(pltpu.get_tpu_info().vmem_capacity_bytes)
    except Exception:                       # conservative (v7x-sized) fallback
        phys = 64 * _MIB
    budget = min(phys // 2, 32 * _MIB) - 8 * _MIB
    return phys, max(budget, 8 * _MIB)


def _vmem_limit(phys: int, working: int) -> int:
    """Scoped-VMEM limit: working set + headroom, clamped below physical."""
    return int(min(phys - 2 * _MIB, max(32 * _MIB, working + 16 * _MIB)))


def _scalar_partial_block(s):
    """Place scalar s at [0,0] of an otherwise-zero (8,128) f32 block."""
    r = jax.lax.broadcasted_iota(jnp.int32, (8, 128), 0)
    c = jax.lax.broadcasted_iota(jnp.int32, (8, 128), 1)
    return jnp.where((r == 0) & (c == 0), s, jnp.float32(0.0))


def _partial_sum_8x128(x2):
    """Reduce an (R, C) f32 value (R % 8 == 0, C % 128 == 0) to an (8,128)
    partial-sum block using only sublane/lane-aligned VPU adds (no scalar
    cross-lane reduction, no SMEM read-modify-write chain)."""
    rows, cols = x2.shape
    acc = x2[:, 0:128]
    for g in range(1, cols // 128):                    # lane-group accumulation
        acc = acc + x2[:, g * 128:(g + 1) * 128]
    # (R,128) -> (R//8, 8, 128) preserves the physical (sublane, lane) layout;
    # summing the leading axis is a loop of vreg adds.
    return acc.reshape(rows // 8, 8, 128).sum(axis=0)


# ----------------------------------------------------------------------------
# Parseval path: loss = sum((yHat - y)^2) / (2 * B)       (no MXU, no basis)
# ----------------------------------------------------------------------------
def _make_parseval_kernel(total_rows: int, tb: int, n: int):
    friendly = (tb % 8 == 0) and (n % 128 == 0)
    needs_mask = (total_rows % tb) != 0

    def kernel(yhat_ref, y_ref, out_ref):
        i = pl.program_id(0)
        d = yhat_ref[...].astype(jnp.float32) - y_ref[...].astype(jnp.float32)
        if needs_mask:                       # zero the padded rows of the last block
            row = jax.lax.broadcasted_iota(jnp.int32, d.shape, 0) + i * tb
            d = jnp.where(row < total_rows, d, jnp.float32(0.0))
        d2 = d * d
        if friendly:
            out_ref[...] = _partial_sum_8x128(d2)
        else:                                # irregular N: scalar fallback
            out_ref[...] = _scalar_partial_block(jnp.sum(d2))

    return kernel


# ----------------------------------------------------------------------------
# Explicit-DFT path: d = yHat - y (formed once) x one-sided [cos | sin] basis
# ----------------------------------------------------------------------------
def _make_dft_kernel(b: int, compute_dtype):
    friendly = (b % 8 == 0)

    def kernel(yhat_hbm, y_hbm, basis_ref, out_ref, yh_s, y_s, d_s):
        k = pl.program_id(0)

        @pl.when(k == 0)
        def _form_d_once():                  # runs once; grid axis is "arbitrary"
            pltpu.sync_copy(yhat_hbm, yh_s)
            pltpu.sync_copy(y_hbm, y_s)
            d_s[...] = (yh_s[...].astype(jnp.float32)
                        - y_s[...].astype(jnp.float32)).astype(compute_dtype)

        f = jnp.dot(d_s[...], basis_ref[...],
                    preferred_element_type=jnp.float32)        # (b, tk)
        f2 = f * f
        if friendly:
            out_ref[...] = _partial_sum_8x128(f2)
        else:
            out_ref[...] = _scalar_partial_block(jnp.sum(f2))

    return kernel


@functools.lru_cache(maxsize=8)
def _one_sided_dft_basis(n: int, cols: int, dtype_name: str):
    """(N, cols) one-sided [cos | sin] DFT basis with sqrt(conjugate-symmetry
    weights) folded in and zero-padded to `cols` columns.  Exact for real d:
    sum(f*f) with f = d @ basis equals sum over ALL N bins of |DFT(d)[k]|^2."""
    freqs = np.arange(n // 2 + 1, dtype=np.int64)
    idx = np.arange(n, dtype=np.int64)
    ang = 2.0 * np.pi * ((idx[:, None] * freqs[None, :]) % n) / n  # exact phase
    w = np.full(freqs.shape, 2.0)
    w[0] = 1.0
    if n % 2 == 0:
        w[-1] = 1.0                          # Nyquist bin is self-conjugate
    sw = np.sqrt(w)[None, :]
    basis = np.concatenate([np.cos(ang) * sw, np.sin(ang) * sw], axis=1)
    pad = cols - basis.shape[1]
    if pad > 0:
        basis = np.concatenate([basis, np.zeros((n, pad))], axis=1)
    return jnp.asarray(basis.astype(np.float32)).astype(jnp.dtype(dtype_name))


# ----------------------------------------------------------------------------
# Wrapper
# ----------------------------------------------------------------------------
def fourrier_loss(yhat, y, *, method: str = "parseval",
                  dft_compute_dtype=jnp.float32):
    """Pallas implementation of FourrierLoss.forward.

    method="parseval": exact algebraic shortcut (production path, fastest).
    method="dft":      explicit one-sided DFT matmul (reference / large-B only;
                       the MXU is under-utilised for small batches).
    dft_compute_dtype: basis/matmul dtype for the DFT path (float32 default;
                       jnp.bfloat16 halves basis DMA at ~1e-3 rel. accuracy).
    """
    assert yhat.shape == y.shape
    n = int(yhat.shape[-1])
    yhat2 = yhat.reshape(-1, n)              # keep native dtype; upcast in-kernel
    y2 = y.reshape(-1, n)
    b = int(yhat2.shape[0])
    in_itemsize = max(jnp.dtype(yhat2.dtype).itemsize,
                      jnp.dtype(y2.dtype).itemsize)
    phys, budget = _vmem_budget()

    if method == "parseval":
        # bytes/row: 2 inputs x 2 pipeline buffers (native) + ~4 f32 temporaries.
        bytes_per_row = n * (4 * in_itemsize + 16)
        tb_budget = max(8, (budget // bytes_per_row) // 8 * 8)
        # Cap at half the batch (>= 2 blocks) so the "parallel" axis can shard
        # across v7x's two TensorCores; full (rounded) batch for tiny inputs.
        tb_cap = _round_up((b + 1) // 2, 8) if b >= 16 else _round_up(b, 8)
        tb = max(8, min(tb_budget, tb_cap))
        num_blocks = -(-b // tb)
        vlimit = _vmem_limit(phys, tb * bytes_per_row)
        partials = pl.pallas_call(
            _make_parseval_kernel(b, tb, n),
            out_shape=jax.ShapeDtypeStruct((num_blocks * 8, 128), jnp.float32),
            grid=(num_blocks,),
            in_specs=[pl.BlockSpec((tb, n), lambda i: (i, 0)),
                      pl.BlockSpec((tb, n), lambda i: (i, 0))],
            out_specs=pl.BlockSpec((8, 128), lambda i: (i, 0)),
            compiler_params=pltpu.CompilerParams(
                dimension_semantics=("parallel",),
                vmem_limit_bytes=vlimit),
        )(yhat2, y2)
        return jnp.sum(partials) * jnp.float32(1.0 / (2.0 * b))

    if method != "dft":
        raise ValueError(f"unknown method: {method}")

    compute_dtype = jnp.dtype(dft_compute_dtype)
    ci = compute_dtype.itemsize
    cols0 = _round_up(2 * (n // 2 + 1), 128)          # one-sided [cos|sin] cols
    resident = b * n * (2 * in_itemsize + ci)         # yh_s + y_s + d_s scratch
    per_col = 2 * n * ci + 3 * b * 4                  # 2 basis buffers + f temps
    avail = max(budget - resident, 0)
    tk = min(cols0, max(128, (avail // per_col) // 128 * 128))
    cols = _round_up(cols0, tk)                       # zero-pad so tk divides cols
    num_tiles = cols // tk
    basis = _one_sided_dft_basis(n, cols, compute_dtype.name)
    working = resident + 2 * n * tk * ci + 3 * b * tk * 4
    vlimit = _vmem_limit(phys, working)
    partials = pl.pallas_call(
        _make_dft_kernel(b, compute_dtype),
        out_shape=jax.ShapeDtypeStruct((num_tiles * 8, 128), jnp.float32),
        grid=(num_tiles,),
        in_specs=[pl.BlockSpec(memory_space=pl.ANY),  # yHat stays in HBM (no pipeline)
                  pl.BlockSpec(memory_space=pl.ANY),  # y stays in HBM (no pipeline)
                  pl.BlockSpec((n, tk), lambda k: (0, k))],
        out_specs=pl.BlockSpec((8, 128), lambda k: (k, 0)),
        scratch_shapes=[pltpu.VMEM((b, n), yhat2.dtype),
                        pltpu.VMEM((b, n), y2.dtype),
                        pltpu.VMEM((b, n), compute_dtype)],
        compiler_params=pltpu.CompilerParams(
            # "arbitrary": d_s is formed once at k == 0 and reused sequentially.
            dimension_semantics=("arbitrary",),
            vmem_limit_bytes=vlimit),
    )(yhat2, y2, basis)
    return jnp.sum(partials) * jnp.float32(1.0 / (2.0 * b * n))


if __name__ == "__main__":
    key = jax.random.PRNGKey(0)
    k1, k2, k3, k4 = jax.random.split(key, 4)

    def reference(a, bb):
        af = jnp.fft.fft(a.astype(jnp.float32), axis=-1)
        bf = jnp.fft.fft(bb.astype(jnp.float32), axis=-1)
        diff = jnp.concatenate([(af.real - bf.real).reshape(-1),
                                (af.imag - bf.imag).reshape(-1)])
        return jnp.mean(diff ** 2)

    # Aligned case (exercises the lane-dense partial-sum path).
    B, N = 8, 128
    yhat = jax.random.normal(k1, (B, N), dtype=jnp.float32)
    y = jax.random.normal(k2, (B, N), dtype=jnp.float32)
    loss_p = fourrier_loss(yhat, y, method="parseval")
    loss_d = fourrier_loss(yhat, y, method="dft")
    jax.block_until_ready(loss_p)
    jax.block_until_ready(loss_d)
    ref = reference(yhat, y)
    assert jnp.allclose(loss_p, ref, rtol=1e-4, atol=1e-4), (loss_p, ref)
    assert jnp.allclose(loss_d, ref, rtol=1e-4, atol=1e-4), (loss_d, ref)

    # Ragged batch (exercises the row-mask / scalar-partial fallback paths).
    B2 = 6
    yhat2 = jax.random.normal(k3, (B2, N), dtype=jnp.float32)
    y2 = jax.random.normal(k4, (B2, N), dtype=jnp.float32)
    loss_p2 = fourrier_loss(yhat2, y2, method="parseval")
    loss_d2 = fourrier_loss(yhat2, y2, method="dft")
    jax.block_until_ready(loss_p2)
    jax.block_until_ready(loss_d2)
    ref2 = reference(yhat2, y2)
    assert jnp.allclose(loss_p2, ref2, rtol=1e-4, atol=1e-4), (loss_p2, ref2)
    assert jnp.allclose(loss_d2, ref2, rtol=1e-4, atol=1e-4), (loss_d2, ref2)

    # TODO(synk): getS/computeSmoothness helpers are unused by forward() and are
    # not translated.
    print("KERNEL_OK")
</pallas_src>

<mosaic_0001>
module attributes {stable_mosaic.version = 11 : i64} {
  func.func @kernel(%arg0: i32, %arg1: memref<8x128xf32, #tpu.memory_space<vmem>>, %arg2: memref<8x128xf32, #tpu.memory_space<vmem>>, %arg3: memref<8x128xf32, #tpu.memory_space<vmem>>) attributes {dimension_semantics = [#tpu.dimension_semantics<parallel>], iteration_bounds = array<i64: 1>, scalar_prefetch = 0 : i64, scratch_operands = 0 : i64, tpu.core_type = #tpu.core_type<tc>, window_params = [{transform_indices = @transform_0, window_bounds = array<i64: 8, 128>}, {transform_indices = @transform_1, window_bounds = array<i64: 8, 128>}, {transform_indices = @transform_2, window_bounds = array<i64: 8, 128>}]} {
    %c0 = arith.constant 0 : index
    %c0_0 = arith.constant 0 : index
    %0 = vector.load %arg1[%c0, %c0_0] : memref<8x128xf32, #tpu.memory_space<vmem>>, vector<8x128xf32>
    %c0_1 = arith.constant 0 : index
    %c0_2 = arith.constant 0 : index
    %1 = vector.load %arg2[%c0_1, %c0_2] : memref<8x128xf32, #tpu.memory_space<vmem>>, vector<8x128xf32>
    %2 = arith.subf %0, %1 : vector<8x128xf32>
    %3 = arith.mulf %2, %2 : vector<8x128xf32>
    %4 = vector.shape_cast %3 : vector<8x128xf32> to vector<1x8x128xf32>
    %cst = arith.constant dense<0.000000e+00> : vector<8x128xf32>
    %5 = vector.multi_reduction <add>, %4, %cst [0] : vector<1x8x128xf32> to vector<8x128xf32>
    %c0_3 = arith.constant 0 : index
    %c0_4 = arith.constant 0 : index
    %6 = vector.load %arg3[%c0_3, %c0_4] : memref<8x128xf32, #tpu.memory_space<vmem>>, vector<8x128xf32>
    tpu.vector_store %arg3[%c0_3, %c0_4], %5 {strides = array<i32>} : memref<8x128xf32, #tpu.memory_space<vmem>>, vector<8x128xf32>,
    return
  }
  func.func @transform_0(%arg0: i32) -> (i32, i32) {
    %c0_i32 = arith.constant 0 : i32
    %c0_i32_0 = arith.constant 0 : i32
    return %arg0, %c0_i32 : i32, i32
  }
  func.func @transform_1(%arg0: i32) -> (i32, i32) {
    %c0_i32 = arith.constant 0 : i32
    %c0_i32_0 = arith.constant 0 : i32
    return %arg0, %c0_i32 : i32, i32
  }
  func.func @transform_2(%arg0: i32) -> (i32, i32) {
    %c0_i32 = arith.constant 0 : i32
    %c0_i32_0 = arith.constant 0 : i32
    return %arg0, %c0_i32 : i32, i32
  }
}

</mosaic_0001>

<llo_original>
// kernel: tpu_custom_call.1
$region0: #{tpu_custom_call.1}
  #allocation0 [shape = 'u32[]', space=smem, size = 0x4, offset = 0x4, fixed_abs, tag = 'smem constant byte address 0x4 - core index']
  #allocation1 [shape = 'u32[144,128]{1,0:T(1,128)}', space=vmem, size = 0x12000, scoped, tag = 'internal scratch']
  %s0 = inlined_call_operand.hbm [shape: f32[8,128], index: 0, kind: input, shape index: {}]
  %s1 = inlined_call_operand.hbm [shape: f32[8,128], index: 1, kind: input, shape index: {}]
  %s2 = inlined_call_operand.hbm [shape: f32[8,128], index: 2, kind: output, shape index: {}]
  %s3 = sld [smem:[#allocation0]]
  $region26: #{tpu_custom_call.1} parent=0
    _
  %s5 = ssub.s32 1, %s3
  %s6 = scalar_select 0, %s5, %s3
  $region1: #{tpu_custom_call.1} parent=0
    #allocation2 [shape = 'u8[4096]{0}', space=vmem, size = 0x1000, scoped, tag = 'input window, operand 0, single buffered']
    #allocation3 [shape = 's32[1]{0}', space=sflag, size = 0x4, scoped, tag = 'scoped memory for tpu_custom_call.1']
    #allocation4 [shape = 's32[1]{0}', space=sflag, size = 0x4, scoped, tag = 'scoped memory for tpu_custom_call.1']
    #allocation5 [shape = 'u8[4096]{0}', space=vmem, size = 0x1000, scoped, tag = 'input window, operand 1, single buffered']
    #allocation6 [shape = 's32[1]{0}', space=sflag, size = 0x4, scoped, tag = 'scoped memory for tpu_custom_call.1']
    #allocation7 [shape = 'u8[4096]{0}', space=vmem, size = 0x1000, scoped, tag = 'output window, operand 0, single buffered']
    %7 = vsyncpa [#allocation3], 0
    %8 = vsyncpa [#allocation6], 0
    %9 = vsyncpa [#allocation4], 0
    // Predicated region
    $region2: #{tpu_custom_call.1} parent=1 // pred_check
      _
    $region3: #{tpu_custom_call.1} parent=1 // pred_check_branch
      %11 = sbr.rel (0) target = $region5
    $region4: #{tpu_custom_call.1} parent=1 // pred_region
      %s13 = ssub.s32 128, 128
      %14 = vsyncadd [#allocation3], %s13
      %s16 = sshll.u32 [#allocation2], 4
      %s17 = int_to_ptr.vmem [resolvable:$true] %s16
      %19 = dma.hbm_to_vmem [thread:$0]  %s0, 128, %s17, [#allocation3]
    $region5: #{tpu_custom_call.1} parent=1 // pred_fallthru
      _
    // Predicated region
    $region6: #{tpu_custom_call.1} parent=1 // pred_check
      _
    $region7: #{tpu_custom_call.1} parent=1 // pred_check_branch
      %21 = sbr.rel (0) target = $region9
    $region8: #{tpu_custom_call.1} parent=1 // pred_region
      %s23 = ssub.s32 128, 128
      %24 = vsyncadd [#allocation6], %s23
      %s26 = sshll.u32 [#allocation5], 4
      %s27 = int_to_ptr.vmem [resolvable:$true] %s26
      %29 = dma.hbm_to_vmem [thread:$0]  %s1, 128, %s27, [#allocation6]
    $region9: #{tpu_custom_call.1} parent=1 // pred_fallthru
      _
    // Predicated region
    $region10: #{tpu_custom_call.1} parent=1 // pred_check
      _
    $region11: #{tpu_custom_call.1} parent=1 // pred_check_branch
      %31 = sbr.rel (0) target = $region13
    $region12: #{tpu_custom_call.1} parent=1 // pred_region
      %32 = dma.done [#allocation3], 128
    $region13: #{tpu_custom_call.1} parent=1 // pred_fallthru
      _
    // Predicated region
    $region14: #{tpu_custom_call.1} parent=1 // pred_check
      _
    $region15: #{tpu_custom_call.1} parent=1 // pred_check_branch
      %34 = sbr.rel (0) target = $region17
    $region16: #{tpu_custom_call.1} parent=1 // pred_region
      %35 = dma.done [#allocation6], 128
    $region17: #{tpu_custom_call.1} parent=1 // pred_fallthru
      _
    %v36 = vld [vmem:[#allocation2] sm:$0xff]
    %v37 = vld [vmem:[#allocation5] sm:$0xff]
    %v38 = vsub.f32 %v36, %v37
    %v39 = vmul.f32 %v38, %v38
    %v40 = vadd.f32 %v39, 0.0
    %41 = vst [vmem:[#allocation7] sm:$0xff] %v40
    // Predicated region
    $region18: #{tpu_custom_call.1} parent=1 // pred_check
      _
    $region19: #{tpu_custom_call.1} parent=1 // pred_check_branch
      %43 = sbr.rel (0) target = $region21
    $region20: #{tpu_custom_call.1} parent=1 // pred_region
      %s45 = ssub.s32 128, 128
      %46 = vsyncadd [#allocation4], %s45
      %s48 = sshll.u32 [#allocation7], 4
      %s49 = int_to_ptr.vmem [resolvable:$true] %s48
      %51 = dma.vmem_to_hbm [thread:$0]  %s49, 128, %s2, [#allocation4]
    $region21: #{tpu_custom_call.1} parent=1 // pred_fallthru
      _
    // Predicated region
    $region22: #{tpu_custom_call.1} parent=1 // pred_check
      _
    $region23: #{tpu_custom_call.1} parent=1 // pred_check_branch
      %53 = sbr.rel (0) target = $region25
    $region24: #{tpu_custom_call.1} parent=1 // pred_region
      %54 = dma.done [#allocation4], 128
    $region25: #{tpu_custom_call.1} parent=1 // pred_fallthru
      _
    %55 = vsyncpa [#allocation3], 1
    %56 = vsyncpa [#allocation6], 1
    %57 = vsyncpa [#allocation4], 1

</llo_original>
